<compile_context>
chip_gen: v6e
topology: v6e:2x2x1
jax: 0.10.0
libtpu: 0.0.40
codegen_flags: <defaults>
</compile_context>

<pallas_src>
import functools

import jax
import jax.numpy as jnp
import numpy as np
from jax.experimental import pallas as pl
from jax.experimental.pallas import tpu as pltpu

# cfg.reg_loss_weight is not provided by the snippet; fix it deterministically.
# TODO(synk): cfg.reg_loss_weight comes from an external config in the original code.
REG_LOSS_WEIGHT = 2.0

_LANES = 128
_SUBLANES = 8
_MAX_ROW_TILE = 512           # 512 rows * 128 lanes = 65536 boxes per grid step


def _ceil_to(x, m):
    return ((x + m - 1) // m) * m


def _giou_kernel(*refs, n_boxes, row_tile, steps_per_split, has_weights, masked):
    """refs = (pt_ref[, w_ref], out_ref).

    pt_ref : (8, row_tile, 128) f32  -- planes 0-3 preds, 4-7 targets
    w_ref  : (row_tile, 128)   f32   -- only when has_weights
    out_ref: (1, 8, 128)       f32   -- output-resident per-split accumulator
    """
    if has_weights:
        pt_ref, w_ref, out_ref = refs
    else:
        pt_ref, out_ref = refs
        w_ref = None

    c = pl.program_id(0)
    i = pl.program_id(1)

    @pl.when(i == 0)
    def _init():
        out_ref[...] = jnp.zeros_like(out_ref)

    px1, py1, px2, py2 = pt_ref[0], pt_ref[1], pt_ref[2], pt_ref[3]
    tx1, ty1, tx2, ty2 = pt_ref[4], pt_ref[5], pt_ref[6], pt_ref[7]

    # intersection
    iw = jnp.maximum(jnp.minimum(px2, tx2) - jnp.maximum(px1, tx1), 0.0)
    ih = jnp.maximum(jnp.minimum(py2, ty2) - jnp.maximum(py1, ty1), 0.0)
    overlap = iw * ih

    # areas / union (note the +1, matching the reference)
    ap = (px2 - px1) * (py2 - py1)
    ag = (tx2 - tx1) * (ty2 - ty1)
    union = ap + ag - overlap + 1.0

    # smallest enclosing box
    ew = jnp.maximum(jnp.maximum(px2, tx2) - jnp.minimum(px1, tx1), 0.0)
    eh = jnp.maximum(jnp.maximum(py2, ty2) - jnp.minimum(py1, ty1), 0.0)
    enclose = ew * eh + 1.0

    # loss = 1 - giou = 2 - overlap/union - union/enclose
    #      = 2 - (overlap*enclose + union*union) * 1/(union*enclose)  (one divide)
    loss = 2.0 - (overlap * enclose + union * union) * pl.reciprocal(union * enclose)

    if has_weights:
        # padded weights are zero -> padded boxes contribute nothing
        loss = loss * w_ref[...]
    elif masked:
        # build the padded-tail validity mask in-kernel (no weights DMA needed)
        base = (c * steps_per_split + i) * (row_tile * _LANES)
        row = jax.lax.broadcasted_iota(jnp.int32, (row_tile, _LANES), 0)
        lane = jax.lax.broadcasted_iota(jnp.int32, (row_tile, _LANES), 1)
        loss = jnp.where(base + row * _LANES + lane < n_boxes, loss, 0.0)

    # fold the (row_tile, 128) tile down to one (8, 128) vreg-shaped partial
    # (pure VALU adds), then accumulate into the output-resident block.
    out_ref[...] += loss.reshape(row_tile // _SUBLANES, _SUBLANES, _LANES).sum(
        axis=0, keepdims=True)


@functools.partial(jax.jit, static_argnames=("max_row_tile",))
def _giou_loss_jit(preds, targets, weights, *, max_row_tile):
    assert max_row_tile % _SUBLANES == 0
    n = preds.shape[0]

    rows = _ceil_to(-(-n // _LANES), _SUBLANES)     # pad to whole (8,128) tiles
    if rows <= max_row_tile:
        num_splits = 1
        row_tile = rows
        rows_padded = rows
    else:
        num_splits = 2                               # v7x: one split per TensorCore
        row_tile = max_row_tile
        rows_padded = _ceil_to(rows, num_splits * row_tile)
    steps_per_split = rows_padded // (num_splits * row_tile)
    npad = rows_padded * _LANES

    # Pack preds+targets into one coordinate-major (8, R, 128) slab -> one DMA/step.
    # TODO(synk): producers should emit boxes in this layout to avoid this transpose.
    pt = jnp.concatenate(
        [preds.astype(jnp.float32), targets.astype(jnp.float32)], axis=1)   # (n, 8)
    pt = jnp.pad(pt, ((0, npad - n), (0, 0)))
    pt_packed = pt.T.reshape(8, rows_padded, _LANES)

    has_weights = weights is not None
    masked = (npad != n) and not has_weights

    in_specs = [
        pl.BlockSpec((8, row_tile, _LANES),
                     lambda c, i: (0, c * steps_per_split + i, 0)),
    ]
    args = [pt_packed]
    if has_weights:
        w = jnp.pad(weights.astype(jnp.float32), (0, npad - n))
        args.append(w.reshape(rows_padded, _LANES))
        in_specs.append(
            pl.BlockSpec((row_tile, _LANES),
                         lambda c, i: (c * steps_per_split + i, 0)))

    kernel = functools.partial(
        _giou_kernel,
        n_boxes=n, row_tile=row_tile, steps_per_split=steps_per_split,
        has_weights=has_weights, masked=masked)

    partials = pl.pallas_call(
        kernel,
        out_shape=jax.ShapeDtypeStruct((num_splits, _SUBLANES, _LANES), jnp.float32),
        grid_spec=pltpu.PrefetchScalarGridSpec(
            num_scalar_prefetch=0,
            grid=(num_splits, steps_per_split),
            in_specs=in_specs,
            out_specs=pl.BlockSpec((1, _SUBLANES, _LANES), lambda c, i: (c, 0, 0)),
        ),
        compiler_params=pltpu.CompilerParams(
            dimension_semantics=("parallel", "arbitrary")),
    )(*args)

    return REG_LOSS_WEIGHT * jnp.sum(partials)


def giou_loss(preds, targets, weights=None, *, max_row_tile=_MAX_ROW_TILE):
    """preds, targets: (N, 4) boxes [x1, y1, x2, y2]; weights: optional (N,)."""
    if preds.shape[0] == 0:
        # zero-iteration grid would leave the output uninitialized; guard here
        return jnp.float32(0.0)
    return _giou_loss_jit(preds, targets, weights, max_row_tile=max_row_tile)


def _giou_loss_ref(preds, targets, weights=None):
    """Pure-JAX reference mirroring the PyTorch forward."""
    preds = preds.astype(jnp.float32)
    targets = targets.astype(jnp.float32)
    lt = jnp.maximum(preds[:, :2], targets[:, :2])
    rb = jnp.minimum(preds[:, 2:], targets[:, 2:])
    wh = jnp.maximum(rb - lt, 0.0)
    overlap = wh[:, 0] * wh[:, 1]
    ap = (preds[:, 2] - preds[:, 0]) * (preds[:, 3] - preds[:, 1])
    ag = (targets[:, 2] - targets[:, 0]) * (targets[:, 3] - targets[:, 1])
    union = ap + ag - overlap + 1
    ious = overlap / union
    enclose_x1y1 = jnp.minimum(preds[:, :2], targets[:, :2])
    enclose_x2y2 = jnp.maximum(preds[:, 2:], targets[:, 2:])
    enclose_wh = jnp.maximum(enclose_x2y2 - enclose_x1y1, 0.0)
    enclose_area = enclose_wh[:, 0] * enclose_wh[:, 1] + 1
    gious = ious - (enclose_area - union) / enclose_area
    loss = 1 - gious
    if weights is not None:
        loss = loss * weights
    return REG_LOSS_WEIGHT * loss.sum()


def _make_boxes(key, n):
    k1, k2 = jax.random.split(key)
    lt = jax.random.uniform(k1, (n, 2), minval=0.0, maxval=10.0)
    wh = jax.random.uniform(k2, (n, 2), minval=0.5, maxval=5.0)
    return jnp.concatenate([lt, lt + wh], axis=1)  # (n, 4), valid x1y1x2y2


if __name__ == "__main__":
    key = jax.random.PRNGKey(0)
    kp, kt, kw, kp2, kt2, kw2 = jax.random.split(key, 6)

    # Case 1: small N (single step, in-kernel masked tail), with / without weights.
    N = 200
    preds = _make_boxes(kp, N)
    targets = _make_boxes(kt, N)
    weights = jax.random.uniform(kw, (N,), minval=0.0, maxval=2.0)

    out_w = jax.block_until_ready(giou_loss(preds, targets, weights))
    ref_w = jax.block_until_ready(_giou_loss_ref(preds, targets, weights))
    np.testing.assert_allclose(np.asarray(out_w), np.asarray(ref_w),
                               rtol=1e-5, atol=1e-4)

    out_nw = jax.block_until_ready(giou_loss(preds, targets))
    ref_nw = jax.block_until_ready(_giou_loss_ref(preds, targets))
    np.testing.assert_allclose(np.asarray(out_nw), np.asarray(ref_nw),
                               rtol=1e-5, atol=1e-4)

    # Case 2: detection-sized N, default config (one large tile, minimal padding).
    N2 = 3000
    preds2 = _make_boxes(kp2, N2)
    targets2 = _make_boxes(kt2, N2)
    weights2 = jax.random.uniform(kw2, (N2,), minval=0.0, maxval=2.0)
    ref2 = jax.block_until_ready(_giou_loss_ref(preds2, targets2))
    out2 = jax.block_until_ready(giou_loss(preds2, targets2))
    np.testing.assert_allclose(np.asarray(out2), np.asarray(ref2),
                               rtol=1e-5, atol=1e-3)

    # Case 3: force the multi-split / multi-step path (exercises the "parallel"
    # core axis, the output-resident accumulator and the in-kernel tail mask)
    # by shrinking the max tile — no need for >65k boxes in the test.
    out3 = jax.block_until_ready(giou_loss(preds2, targets2, max_row_tile=8))
    np.testing.assert_allclose(np.asarray(out3), np.asarray(ref2),
                               rtol=1e-5, atol=1e-3)

    out4 = jax.block_until_ready(giou_loss(preds2, targets2, weights2,
                                           max_row_tile=8))
    ref4 = jax.block_until_ready(_giou_loss_ref(preds2, targets2, weights2))
    np.testing.assert_allclose(np.asarray(out4), np.asarray(ref4),
                               rtol=1e-5, atol=1e-3)

    print("KERNEL_OK")
</pallas_src>

<mosaic_0001>
module attributes {stable_mosaic.version = 11 : i64} {
  func.func @_giou_kernel(%arg0: i32, %arg1: i32, %arg2: memref<8x8x128xf32, #tpu.memory_space<vmem>>, %arg3: memref<8x128xf32, #tpu.memory_space<vmem>>, %arg4: memref<1x8x128xf32, #tpu.memory_space<vmem>>) attributes {dimension_semantics = [#tpu.dimension_semantics<parallel>, #tpu.dimension_semantics<arbitrary>], iteration_bounds = array<i64: 1, 1>, scalar_prefetch = 0 : i64, scratch_operands = 0 : i64, tpu.core_type = #tpu.core_type<tc>, window_params = [{transform_indices = @transform_0, window_bounds = array<i64: 8, 8, 128>}, {transform_indices = @transform_1, window_bounds = array<i64: 8, 128>}, {transform_indices = @transform_2, window_bounds = array<i64: 1, 8, 128>}]} {
    %c0_i32 = arith.constant 0 : i32
    %0 = arith.cmpi eq, %arg1, %c0_i32 : i32
    %1 = arith.extui %0 : i1 to i32
    %c0_i32_0 = arith.constant 0 : i32
    %2 = arith.cmpi ne, %1, %c0_i32_0 : i32
    scf.if %2 {
      %cst_32 = arith.constant 0.000000e+00 : f32
      %69 = vector.broadcast %cst_32 : f32 to vector<1x8x128xf32>
      %c0_33 = arith.constant 0 : index
      %c0_34 = arith.constant 0 : index
      %c0_35 = arith.constant 0 : index
      %70 = vector.load %arg4[%c0_33, %c0_34, %c0_35] : memref<1x8x128xf32, #tpu.memory_space<vmem>>, vector<1x8x128xf32>
      tpu.vector_store %arg4[%c0_33, %c0_34, %c0_35], %69 {strides = array<i32>} : memref<1x8x128xf32, #tpu.memory_space<vmem>>, vector<1x8x128xf32>,
    } else {
    }
    %c0 = arith.constant 0 : index
    %c0_1 = arith.constant 0 : index
    %c0_2 = arith.constant 0 : index
    %3 = vector.load %arg2[%c0, %c0_1, %c0_2] : memref<8x8x128xf32, #tpu.memory_space<vmem>>, vector<1x8x128xf32>
    %4 = vector.shape_cast %3 : vector<1x8x128xf32> to vector<8x128xf32>
    %c1 = arith.constant 1 : index
    %c0_3 = arith.constant 0 : index
    %c0_4 = arith.constant 0 : index
    %5 = vector.load %arg2[%c1, %c0_3, %c0_4] : memref<8x8x128xf32, #tpu.memory_space<vmem>>, vector<1x8x128xf32>
    %6 = vector.shape_cast %5 : vector<1x8x128xf32> to vector<8x128xf32>
    %c2 = arith.constant 2 : index
    %c0_5 = arith.constant 0 : index
    %c0_6 = arith.constant 0 : index
    %7 = vector.load %arg2[%c2, %c0_5, %c0_6] : memref<8x8x128xf32, #tpu.memory_space<vmem>>, vector<1x8x128xf32>
    %8 = vector.shape_cast %7 : vector<1x8x128xf32> to vector<8x128xf32>
    %c3 = arith.constant 3 : index
    %c0_7 = arith.constant 0 : index
    %c0_8 = arith.constant 0 : index
    %9 = vector.load %arg2[%c3, %c0_7, %c0_8] : memref<8x8x128xf32, #tpu.memory_space<vmem>>, vector<1x8x128xf32>
    %10 = vector.shape_cast %9 : vector<1x8x128xf32> to vector<8x128xf32>
    %c4 = arith.constant 4 : index
    %c0_9 = arith.constant 0 : index
    %c0_10 = arith.constant 0 : index
    %11 = vector.load %arg2[%c4, %c0_9, %c0_10] : memref<8x8x128xf32, #tpu.memory_space<vmem>>, vector<1x8x128xf32>
    %12 = vector.shape_cast %11 : vector<1x8x128xf32> to vector<8x128xf32>
    %c5 = arith.constant 5 : index
    %c0_11 = arith.constant 0 : index
    %c0_12 = arith.constant 0 : index
    %13 = vector.load %arg2[%c5, %c0_11, %c0_12] : memref<8x8x128xf32, #tpu.memory_space<vmem>>, vector<1x8x128xf32>
    %14 = vector.shape_cast %13 : vector<1x8x128xf32> to vector<8x128xf32>
    %c6 = arith.constant 6 : index
    %c0_13 = arith.constant 0 : index
    %c0_14 = arith.constant 0 : index
    %15 = vector.load %arg2[%c6, %c0_13, %c0_14] : memref<8x8x128xf32, #tpu.memory_space<vmem>>, vector<1x8x128xf32>
    %16 = vector.shape_cast %15 : vector<1x8x128xf32> to vector<8x128xf32>
    %c7 = arith.constant 7 : index
    %c0_15 = arith.constant 0 : index
    %c0_16 = arith.constant 0 : index
    %17 = vector.load %arg2[%c7, %c0_15, %c0_16] : memref<8x8x128xf32, #tpu.memory_space<vmem>>, vector<1x8x128xf32>
    %18 = vector.shape_cast %17 : vector<1x8x128xf32> to vector<8x128xf32>
    %19 = arith.minimumf %8, %16 : vector<8x128xf32>
    %20 = arith.maximumf %4, %12 : vector<8x128xf32>
    %21 = arith.subf %19, %20 : vector<8x128xf32>
    %cst = arith.constant 0.000000e+00 : f32
    %22 = vector.broadcast %cst : f32 to vector<8x128xf32>
    %23 = arith.maximumf %21, %22 : vector<8x128xf32>
    %24 = arith.minimumf %10, %18 : vector<8x128xf32>
    %25 = arith.maximumf %6, %14 : vector<8x128xf32>
    %26 = arith.subf %24, %25 : vector<8x128xf32>
    %cst_17 = arith.constant 0.000000e+00 : f32
    %27 = vector.broadcast %cst_17 : f32 to vector<8x128xf32>
    %28 = arith.maximumf %26, %27 : vector<8x128xf32>
    %29 = arith.mulf %23, %28 : vector<8x128xf32>
    %30 = arith.subf %8, %4 : vector<8x128xf32>
    %31 = arith.subf %10, %6 : vector<8x128xf32>
    %32 = arith.mulf %30, %31 : vector<8x128xf32>
    %33 = arith.subf %16, %12 : vector<8x128xf32>
    %34 = arith.subf %18, %14 : vector<8x128xf32>
    %35 = arith.mulf %33, %34 : vector<8x128xf32>
    %36 = arith.addf %32, %35 : vector<8x128xf32>
    %37 = arith.subf %36, %29 : vector<8x128xf32>
    %cst_18 = arith.constant 1.000000e+00 : f32
    %38 = vector.broadcast %cst_18 : f32 to vector<8x128xf32>
    %39 = arith.addf %37, %38 : vector<8x128xf32>
    %40 = arith.maximumf %8, %16 : vector<8x128xf32>
    %41 = arith.minimumf %4, %12 : vector<8x128xf32>
    %42 = arith.subf %40, %41 : vector<8x128xf32>
    %cst_19 = arith.constant 0.000000e+00 : f32
    %43 = vector.broadcast %cst_19 : f32 to vector<8x128xf32>
    %44 = arith.maximumf %42, %43 : vector<8x128xf32>
    %45 = arith.maximumf %10, %18 : vector<8x128xf32>
    %46 = arith.minimumf %6, %14 : vector<8x128xf32>
    %47 = arith.subf %45, %46 : vector<8x128xf32>
    %cst_20 = arith.constant 0.000000e+00 : f32
    %48 = vector.broadcast %cst_20 : f32 to vector<8x128xf32>
    %49 = arith.maximumf %47, %48 : vector<8x128xf32>
    %50 = arith.mulf %44, %49 : vector<8x128xf32>
    %cst_21 = arith.constant 1.000000e+00 : f32
    %51 = vector.broadcast %cst_21 : f32 to vector<8x128xf32>
    %52 = arith.addf %50, %51 : vector<8x128xf32>
    %53 = arith.mulf %29, %52 : vector<8x128xf32>
    %54 = arith.mulf %39, %39 : vector<8x128xf32>
    %55 = arith.addf %53, %54 : vector<8x128xf32>
    %56 = arith.mulf %39, %52 : vector<8x128xf32>
    %57 = tpu.reciprocal %56 : vector<8x128xf32> -> vector<8x128xf32>
    %58 = arith.mulf %55, %57 : vector<8x128xf32>
    %cst_22 = arith.constant 2.000000e+00 : f32
    %59 = vector.broadcast %cst_22 : f32 to vector<8x128xf32>
    %60 = arith.subf %59, %58 : vector<8x128xf32>
    %c0_23 = arith.constant 0 : index
    %c0_24 = arith.constant 0 : index
    %61 = vector.load %arg3[%c0_23, %c0_24] : memref<8x128xf32, #tpu.memory_space<vmem>>, vector<8x128xf32>
    %62 = arith.mulf %60, %61 : vector<8x128xf32>
    %c0_25 = arith.constant 0 : index
    %c0_26 = arith.constant 0 : index
    %c0_27 = arith.constant 0 : index
    %63 = vector.load %arg4[%c0_25, %c0_26, %c0_27] : memref<1x8x128xf32, #tpu.memory_space<vmem>>, vector<1x8x128xf32>
    %64 = vector.shape_cast %62 : vector<8x128xf32> to vector<1x8x128xf32>
    %cst_28 = arith.constant dense<0.000000e+00> : vector<8x128xf32>
    %65 = vector.multi_reduction <add>, %64, %cst_28 [0] : vector<1x8x128xf32> to vector<8x128xf32>
    %66 = vector.shape_cast %65 : vector<8x128xf32> to vector<1x8x128xf32>
    %67 = arith.addf %63, %66 : vector<1x8x128xf32>
    %c0_29 = arith.constant 0 : index
    %c0_30 = arith.constant 0 : index
    %c0_31 = arith.constant 0 : index
    %68 = vector.load %arg4[%c0_29, %c0_30, %c0_31] : memref<1x8x128xf32, #tpu.memory_space<vmem>>, vector<1x8x128xf32>
    tpu.vector_store %arg4[%c0_29, %c0_30, %c0_31], %67 {strides = array<i32>} : memref<1x8x128xf32, #tpu.memory_space<vmem>>, vector<1x8x128xf32>,
    return
  }
  func.func @transform_0(%arg0: i32, %arg1: i32) -> (i32, i32, i32) {
    %c1_i32 = arith.constant 1 : i32
    %0 = arith.muli %arg0, %c1_i32 : i32
    %1 = arith.addi %0, %arg1 : i32
    %c0_i32 = arith.constant 0 : i32
    %c0_i32_0 = arith.constant 0 : i32
    %c0_i32_1 = arith.constant 0 : i32
    return %c0_i32, %1, %c0_i32_0 : i32, i32, i32
  }
  func.func @transform_1(%arg0: i32, %arg1: i32) -> (i32, i32) {
    %c1_i32 = arith.constant 1 : i32
    %0 = arith.muli %arg0, %c1_i32 : i32
    %1 = arith.addi %0, %arg1 : i32
    %c0_i32 = arith.constant 0 : i32
    %c0_i32_0 = arith.constant 0 : i32
    return %1, %c0_i32 : i32, i32
  }
  func.func @transform_2(%arg0: i32, %arg1: i32) -> (i32, i32, i32) {
    %c0_i32 = arith.constant 0 : i32
    %c0_i32_0 = arith.constant 0 : i32
    %c0_i32_1 = arith.constant 0 : i32
    return %arg0, %c0_i32, %c0_i32_0 : i32, i32, i32
  }
}

</mosaic_0001>

<llo_original>
// kernel: _giou_loss_jit.1
$region0: #{_giou_loss_jit.1}
  #allocation0 [shape = 'u32[]', space=smem, size = 0x4, offset = 0x4, fixed_abs, tag = 'smem constant byte address 0x4 - core index']
  #allocation1 [shape = 'u32[144,128]{1,0:T(1,128)}', space=vmem, size = 0x12000, scoped, tag = 'internal scratch']
  %s0 = inlined_call_operand.vmem [shape: f32[8,8,128], index: 0, kind: input, shape index: {}]
  %s1 = inlined_call_operand.vmem [shape: f32[8,128], index: 1, kind: input, shape index: {}]
  %s2 = inlined_call_operand.vmem [shape: f32[1,8,128], index: 2, kind: output, shape index: {}]
  %s3 = sld [smem:[#allocation0]]
  $region22: #{_giou_loss_jit.1} parent=0
    _
  %s5 = ssub.s32 1, %s3
  %s6 = scalar_select 0, %s5, %s3
  // Predicated region
  $region2: #{_giou_loss_jit.1} parent=0 // pred_check
    _
  $region3: #{_giou_loss_jit.1} parent=0 // pred_check_branch
    %8 = sbr.rel (0) target = $region5
  $region4: #{_giou_loss_jit.1} parent=0 // pred_region
    %s9 = sadd.s32 0, 0
    %p10 = scmp.lt.s32.totalorder %s9, 0
    %s11 = scalar_select %p10, %s9, 0
    %s12 = smul.addr %s11, 8
    %s13 = scalar_lea.vmem %s0, %s12
    %s14 = sadd.s32 0, 0
  $region5: #{_giou_loss_jit.1} parent=0 // pred_fallthru
    _
  // Predicated region
  $region6: #{_giou_loss_jit.1} parent=0 // pred_check
    _
  $region7: #{_giou_loss_jit.1} parent=0 // pred_check_branch
    %16 = sbr.rel (0) target = $region9
  $region8: #{_giou_loss_jit.1} parent=0 // pred_region
    %s17 = sadd.s32 0, 0
    %p18 = scmp.lt.s32.totalorder %s17, 0
    %s19 = scalar_select %p18, %s17, 0
    %s20 = smul.addr %s19, 8
    %s21 = scalar_lea.vmem %s1, %s20
    %s22 = sadd.s32 0, 0
  $region9: #{_giou_loss_jit.1} parent=0 // pred_fallthru
    _
  %s23 = sadd.s32 0, 0
  %p24 = scmp.lt.s32.totalorder %s23, 0
  %s25 = scalar_select %p24, %s23, 0
  %s26 = smul.addr %s25, 8
  %s27 = scalar_lea.vmem %s0, %s26
  %s28 = sadd.s32 0, 0
  %p29 = scmp.lt.s32.totalorder %s28, 0
  %s30 = scalar_select %p29, %s28, 0
  %s31 = smul.addr %s30, 8
  %s32 = scalar_lea.vmem %s1, %s31
  %s33 = sadd.s32 0, 0
  %p34 = scmp.lt.s32.totalorder %s33, 0
  %s35 = scalar_select %p34, %s33, 0
  %s36 = smul.addr %s35, 8
  %s37 = scalar_lea.vmem %s0, %s36
  %s38 = sadd.s32 0, 0
  %s39 = sadd.s32 0, 0
  %p40 = scmp.lt.s32.totalorder %s39, 0
  %s41 = scalar_select %p40, %s39, 0
  %s42 = smul.addr %s41, 8
  %s43 = scalar_lea.vmem %s1, %s42
  %s44 = sadd.s32 0, 0
  %p45 = scmp.eq.s32.totalorder 0, 0
  // Predicated region
  $region10: #{_giou_loss_jit.1} parent=0 // pred_check
    %p46 = pneg %p45
  $region11: #{_giou_loss_jit.1} parent=0 // pred_check_branch
    %48 = sbr.rel (%p46) target = $region13
  $region12: #{_giou_loss_jit.1} parent=0 // pred_region
    %49 = vst [vmem:[%s2] sm:$0xff] 0.0
  $region13: #{_giou_loss_jit.1} parent=0 // pred_fallthru
    _
  %v50 = vld [vmem:[%s37] sm:$0xff]
  %s51 = scalar_lea.vmem %s37, 8
  %v52 = vld [vmem:[%s51] sm:$0xff]
  %s53 = scalar_lea.vmem %s37, 16
  %v54 = vld [vmem:[%s53] sm:$0xff]
  %s55 = scalar_lea.vmem %s37, 24
  %v56 = vld [vmem:[%s55] sm:$0xff]
  %s57 = scalar_lea.vmem %s37, 32
  %v58 = vld [vmem:[%s57] sm:$0xff]
  %s59 = scalar_lea.vmem %s37, 40
  %v60 = vld [vmem:[%s59] sm:$0xff]
  %s61 = scalar_lea.vmem %s37, 48
  %v62 = vld [vmem:[%s61] sm:$0xff]
  %s63 = scalar_lea.vmem %s37, 56
  %v64 = vld [vmem:[%s63] sm:$0xff]
  %v65 = vmin.f32 %v54, %v62
  %v66 = vmax.f32 %v50, %v58
  %v67 = vsub.f32 %v65, %v66
  %v68 = vmax.f32 %v67, 0.0
  %v69 = vmin.f32 %v56, %v64
  %v70 = vmax.f32 %v52, %v60
  %v71 = vsub.f32 %v69, %v70
  %v72 = vmax.f32 %v71, 0.0
  %v73 = vmul.f32 %v68, %v72
  %v74 = vsub.f32 %v54, %v50
  %v75 = vsub.f32 %v56, %v52
  %v76 = vmul.f32 %v74, %v75
  %v77 = vsub.f32 %v62, %v58
  %v78 = vsub.f32 %v64, %v60
  %v79 = vmul.f32 %v77, %v78
  %v80 = vadd.f32 %v76, %v79
  %v81 = vsub.f32 %v80, %v73
  %v82 = vadd.f32 %v81, 1.0
  %v83 = vmax.f32 %v54, %v62
  %v84 = vmin.f32 %v50, %v58
  %v85 = vsub.f32 %v83, %v84
  %v86 = vmax.f32 %v85, 0.0
  %v87 = vmax.f32 %v56, %v64
  %v88 = vmin.f32 %v52, %v60
  %v89 = vsub.f32 %v87, %v88
  %v90 = vmax.f32 %v89, 0.0
  %v91 = vmul.f32 %v86, %v90
  %v92 = vadd.f32 %v91, 1.0
  %v93 = vmul.f32 %v73, %v92
  %v94 = vmul.f32 %v82, %v82
  %v95 = vadd.f32 %v93, %v94
  %v96 = vmul.f32 %v82, %v92
  %v97 = vrcp.pop %v96
  %v98 = vmul.f32 %v95, %v97
  %v99 = vsub.f32 2.0, %v98
  %v100 = vld [vmem:[%s43] sm:$0xff]
  %v101 = vmul.f32 %v99, %v100
  %v102 = vld [vmem:[%s2] sm:$0xff]
  %v103 = vadd.f32 %v101, 0.0
  %v104 = vadd.f32 %v102, %v103
  %105 = vst [vmem:[%s2] sm:$0xff] %v104
  // Predicated region
  $region14: #{_giou_loss_jit.1} parent=0 // pred_check
    _
  $region15: #{_giou_loss_jit.1} parent=0 // pred_check_branch
    %107 = sbr.rel (0) target = $region17
  $region16: #{_giou_loss_jit.1} parent=0 // pred_region
    _
  $region17: #{_giou_loss_jit.1} parent=0 // pred_fallthru
    _
  // Predicated region
  $region18: #{_giou_loss_jit.1} parent=0 // pred_check
    _
  $region19: #{_giou_loss_jit.1} parent=0 // pred_check_branch
    %109 = sbr.rel (0) target = $region21
  $region20: #{_giou_loss_jit.1} parent=0 // pred_region
    _
  $region21: #{_giou_loss_jit.1} parent=0 // pred_fallthru
    _

</llo_original>
